<compile_context>
chip_gen: v7x
topology: tpu7x:2x2x1
jax: 0.10.0
libtpu: 0.0.40
codegen_flags: <defaults>
</compile_context>

<pallas_src>
import functools

import jax
import jax.numpy as jnp
from jax import lax
from jax.experimental import pallas as pl
from jax.experimental.pallas import tpu as pltpu


# --------------------------------------------------------------------------- #
# Kernels
# --------------------------------------------------------------------------- #
def _fused_kernel(x_ref, w_ref, b_ref, o_ref, *, n_layers, compute_dtype):
    """One grid step per batch tile; all layers unrolled, weights resident in VMEM."""
    h = x_ref[...].astype(compute_dtype)

    def body(l, h):
        # MXU consumes the weights' native dtype; accumulate in f32.
        acc = jnp.dot(h, w_ref[l], preferred_element_type=jnp.float32)
        acc = jnp.maximum(acc + b_ref[l].astype(jnp.float32), 0.0)   # f32 bias + ReLU
        return acc.astype(compute_dtype)                             # next layer's LHS

    h = lax.fori_loop(0, n_layers, body, h, unroll=True)
    o_ref[...] = h.astype(o_ref.dtype)                               # single cast + store


def _stream_kernel(x_ref, w_ref, b_ref, o_ref, act_ref, *, tb, compute_dtype):
    """Grid = (layer, batch_tile), layer outermost: each W[l] is fetched exactly once.

    x_ref  : resident (B, H) input block (fetched once, Buffered(1))
    w_ref  : (H, H) weight panel for the current layer (double-buffered stream)
    b_ref  : (1, H) bias for the current layer
    o_ref  : resident (B, H) output block (written on the last layer only)
    act_ref: (nb, tb, H) running activations in the compute dtype
    """
    layer = pl.program_id(0)
    bi = pl.program_id(1)
    last = pl.num_programs(0) - 1
    row = pl.multiple_of(bi * tb, tb)

    @pl.when(layer == 0)
    def _():
        act_ref[bi] = x_ref[pl.ds(row, tb), :].astype(compute_dtype)

    h = jnp.dot(act_ref[bi], w_ref[...], preferred_element_type=jnp.float32)
    h = jnp.maximum(h + b_ref[...].astype(jnp.float32), 0.0)

    @pl.when(layer < last)
    def _():
        act_ref[bi] = h.astype(compute_dtype)

    @pl.when(layer == last)
    def _():
        o_ref[pl.ds(row, tb), :] = h.astype(o_ref.dtype)


# --------------------------------------------------------------------------- #
# Wrapper
# --------------------------------------------------------------------------- #
_TILE_CANDIDATES = (1024, 512, 256, 128, 64, 32, 16, 8)


def _vmem_capacity_bytes():
    try:
        return int(pltpu.get_tpu_info().vmem_capacity_bytes)
    except Exception:
        return 64 << 20   # conservative fallback (v7x per-TensorCore VMEM)


@functools.partial(jax.jit,
                   static_argnames=("n_hidden_layers", "mode", "max_batch_tile"))
def hidden_layer_forward(x, weights, biases, n_hidden_layers, mode=None,
                         max_batch_tile=1024):
    """x: (B, H); weights: (L, H, H); biases: (L, H). Returns (B, H).

    mode: None/"auto" (pick by VMEM fit), "fused" (weights resident, batch tiled),
          "stream" (per-layer weight streaming, layer axis outermost).
    """
    if n_hidden_layers == 0:
        return x                                    # nn.Identity() branch

    B, H = x.shape
    L = n_hidden_layers
    assert weights.shape == (L, H, H) and biases.shape == (L, H)
    b3 = biases.reshape(L, 1, H)

    compute_dtype = weights.dtype                   # MXU operand dtype (bf16 at full rate)
    wb = weights.dtype.itemsize
    xb = x.dtype.itemsize
    cb = jnp.dtype(compute_dtype).itemsize

    phys = _vmem_capacity_bytes()
    vmem_cap = max(24 << 20, (phys * 3) // 4)       # request ceiling (~48 MiB v7x, ~96 MiB v5e/v6e)
    fused_budget = max(16 << 20, (phys * 6) // 10)  # threshold for keeping all weights resident

    tiles = [t for t in _TILE_CANDIDATES
             if t <= min(B, max_batch_tile) and B % t == 0] or [B]

    def fused_need(tb):
        return (L * H * H * wb + L * H * wb         # resident weights + biases (Buffered(1))
                + 4 * tb * H * xb                   # x / out blocks, double-buffered
                + 2 * tb * H * 4                    # f32 accumulator temporaries
                + (2 << 20))                        # headroom

    def stream_need(tb):
        return (2 * H * H * wb + 2 * H * wb         # W[l] / b[l] double-buffered
                + B * H * xb                        # resident input (Buffered(1))
                + 2 * B * H * xb                    # resident output block
                + B * H * cb                        # activation scratch
                + 2 * tb * H * 4                    # f32 temporaries
                + (2 << 20))

    fused_tb = next((t for t in tiles if fused_need(t) <= fused_budget), None)
    if mode == "fused" and fused_tb is None:
        fused_tb = tiles[-1]
    use_fused = (mode == "fused") or (mode in (None, "auto") and fused_tb is not None)

    if use_fused:
        tb = fused_tb
        nb = B // tb
        vmem_limit = int(min(vmem_cap, max((fused_need(tb) * 5) // 4, 32 << 20)))
        return pl.pallas_call(
            functools.partial(_fused_kernel, n_layers=L, compute_dtype=compute_dtype),
            out_shape=jax.ShapeDtypeStruct((B, H), x.dtype),
            grid=(nb,),
            in_specs=[
                pl.BlockSpec((tb, H), lambda i: (i, 0)),                 # x tile
                pl.BlockSpec((L, H, H), lambda i: (0, 0, 0),
                             pipeline_mode=pl.Buffered(1)),              # resident weights
                pl.BlockSpec((L, 1, H), lambda i: (0, 0, 0),
                             pipeline_mode=pl.Buffered(1)),              # resident biases
            ],
            out_specs=pl.BlockSpec((tb, H), lambda i: (i, 0)),
            compiler_params=pltpu.CompilerParams(
                dimension_semantics=("parallel",),   # megacore / v7x dual-TC over batch tiles
                vmem_limit_bytes=vmem_limit),
        )(x, weights, b3)

    # ---- streaming path: layer outermost, each weight panel DMA'd exactly once ----
    tb = next((t for t in tiles if stream_need(t) <= vmem_cap), tiles[-1])
    nb = B // tb
    vmem_limit = int(min(vmem_cap, max((stream_need(tb) * 5) // 4, 32 << 20)))

    return pl.pallas_call(
        functools.partial(_stream_kernel, tb=tb, compute_dtype=compute_dtype),
        out_shape=jax.ShapeDtypeStruct((B, H), x.dtype),
        grid_spec=pltpu.PrefetchScalarGridSpec(
            num_scalar_prefetch=0,
            grid=(L, nb),                                        # layer outer, batch inner
            in_specs=[
                pl.BlockSpec((B, H), lambda l, bi: (0, 0),
                             pipeline_mode=pl.Buffered(1)),      # resident input, fetched once
                pl.BlockSpec((None, H, H), lambda l, bi: (l, 0, 0)),   # W[l] -> (H, H)
                pl.BlockSpec((None, 1, H), lambda l, bi: (l, 0, 0)),   # b[l] -> (1, H)
            ],
            out_specs=pl.BlockSpec((B, H), lambda l, bi: (0, 0)),      # resident output
            scratch_shapes=[pltpu.VMEM((nb, tb, H), compute_dtype)],   # running activations
        ),
        compiler_params=pltpu.CompilerParams(
            # Layer axis is a true sequential dependence; batch kept "arbitrary" so that
            # no parallel dim trails an arbitrary one (megacore is exploited by the fused
            # path, which covers the common case).
            dimension_semantics=("arbitrary", "arbitrary"),
            vmem_limit_bytes=vmem_limit),
    )(x, weights, b3)


# --------------------------------------------------------------------------- #
# Params + reference
# --------------------------------------------------------------------------- #
def init_params(key, n_hidden_layers, hidden_size, dtype=jnp.float32):
    """Deterministic synthetic parameters for the stacked SkelMaPLe blocks."""
    if n_hidden_layers == 0:
        return (jnp.zeros((0, hidden_size, hidden_size), dtype),
                jnp.zeros((0, hidden_size), dtype))
    kw, kb = jax.random.split(key)
    scale = 1.0 / jnp.sqrt(float(hidden_size))
    weights = (jax.random.normal(
        kw, (n_hidden_layers, hidden_size, hidden_size), jnp.float32) * scale
    ).astype(dtype)
    biases = (jax.random.normal(
        kb, (n_hidden_layers, hidden_size), jnp.float32) * 0.01).astype(dtype)
    return weights, biases


def _reference_forward(x, weights, biases, n_hidden_layers):
    """Pure-JAX reference mirroring the kernel semantics (activations carried in the
    weights' dtype, f32 accumulation)."""
    if n_hidden_layers == 0:
        return x
    cdt = weights.dtype
    h = x.astype(cdt)
    for l in range(n_hidden_layers):
        acc = jnp.dot(h, weights[l], preferred_element_type=jnp.float32)
        acc = jnp.maximum(acc + biases[l].astype(jnp.float32), 0.0)
        h = acc.astype(cdt)
    return h.astype(x.dtype)


# --------------------------------------------------------------------------- #
# Demo / self-test
# --------------------------------------------------------------------------- #
if __name__ == "__main__":
    B = 16             # batch
    HIDDEN = 128       # hidden_size
    N_LAYERS = 3       # n_hidden_layers

    key = jax.random.PRNGKey(0)
    kx, kp = jax.random.split(key)
    x = jax.random.normal(kx, (B, HIDDEN), jnp.float32)
    weights, biases = init_params(kp, N_LAYERS, HIDDEN)
    ref = _reference_forward(x, weights, biases, N_LAYERS)

    # Auto path (fused: weights resident, single batch tile here).
    out = jax.block_until_ready(hidden_layer_forward(x, weights, biases, N_LAYERS))
    assert out.shape == (B, HIDDEN) and out.dtype == x.dtype
    assert jnp.allclose(out, ref, atol=1e-4, rtol=1e-4)

    # Fused path with multiple batch tiles (parallel grid over batch).
    out_f = jax.block_until_ready(
        hidden_layer_forward(x, weights, biases, N_LAYERS, mode="fused",
                             max_batch_tile=8))
    assert jnp.allclose(out_f, ref, atol=1e-4, rtol=1e-4)

    # Streaming path (layer-outermost weight streaming, 2 batch tiles).
    out_s = jax.block_until_ready(
        hidden_layer_forward(x, weights, biases, N_LAYERS, mode="stream",
                             max_batch_tile=8))
    assert jnp.allclose(out_s, ref, atol=1e-4, rtol=1e-4)

    # bf16 parameters: bf16 MXU operands + bf16 inter-layer activations, f32 accumulation.
    w16, b16 = init_params(kp, N_LAYERS, HIDDEN, dtype=jnp.bfloat16)
    ref16 = _reference_forward(x, w16, b16, N_LAYERS)
    out16 = jax.block_until_ready(hidden_layer_forward(x, w16, b16, N_LAYERS))
    assert jnp.allclose(out16, ref16, atol=2e-2, rtol=2e-2)
    out16_s = jax.block_until_ready(
        hidden_layer_forward(x, w16, b16, N_LAYERS, mode="stream", max_batch_tile=8))
    assert jnp.allclose(out16_s, ref16, atol=2e-2, rtol=2e-2)

    # Identity (n_hidden_layers == 0) branch.
    w0, b0 = init_params(kp, 0, HIDDEN)
    out_id = jax.block_until_ready(hidden_layer_forward(x, w0, b0, 0))
    assert jnp.array_equal(out_id, x)

    print("KERNEL_OK")
</pallas_src>

<mosaic_0001>
module attributes {stable_mosaic.version = 11 : i64} {
  func.func @_fused_kernel(%arg0: i32, %arg1: memref<16x128xf32, #tpu.memory_space<vmem>>, %arg2: memref<3x128x128xf32, #tpu.memory_space<vmem>>, %arg3: memref<3x1x128xf32, #tpu.memory_space<vmem>>, %arg4: memref<16x128xf32, #tpu.memory_space<vmem>>) attributes {dimension_semantics = [#tpu.dimension_semantics<parallel>], iteration_bounds = array<i64: 1>, scalar_prefetch = 0 : i64, scratch_operands = 0 : i64, tpu.core_type = #tpu.core_type<tc>, window_params = [{transform_indices = @transform_0, window_bounds = array<i64: 16, 128>}, {pipeline_mode = #tpu.pipeline_mode<synchronous>, transform_indices = @transform_1, window_bounds = array<i64: 3, 128, 128>}, {pipeline_mode = #tpu.pipeline_mode<synchronous>, transform_indices = @transform_2, window_bounds = array<i64: 3, 1, 128>}, {transform_indices = @transform_3, window_bounds = array<i64: 16, 128>}]} {
    %c0 = arith.constant 0 : index
    %c0_0 = arith.constant 0 : index
    %0 = vector.load %arg1[%c0, %c0_0] : memref<16x128xf32, #tpu.memory_space<vmem>>, vector<16x128xf32>
    %c0_i32 = arith.constant 0 : i32
    %1 = arith.index_cast %c0_i32 : i32 to index
    %c0_1 = arith.constant 0 : index
    %c0_2 = arith.constant 0 : index
    %2 = vector.load %arg2[%1, %c0_1, %c0_2] : memref<3x128x128xf32, #tpu.memory_space<vmem>>, vector<1x128x128xf32>
    %3 = vector.shape_cast %2 : vector<1x128x128xf32> to vector<128x128xf32>
    %cst = arith.constant dense<0.000000e+00> : vector<16x128xf32>
    %4 = tpu.matmul %0, %3, %cst {dimension_numbers = #tpu.dot_dimension_numbers<[1], [0], [0], [1], [0, 0, 1, 1], [], []>} : vector<16x128xf32>, vector<128x128xf32>, vector<16x128xf32> -> vector<16x128xf32>
    %5 = arith.index_cast %c0_i32 : i32 to index
    %c0_3 = arith.constant 0 : index
    %c0_4 = arith.constant 0 : index
    %6 = vector.load %arg3[%5, %c0_3, %c0_4] : memref<3x1x128xf32, #tpu.memory_space<vmem>>, vector<1x1x128xf32>
    %7 = vector.shape_cast %6 : vector<1x1x128xf32> to vector<1x128xf32>
    %8 = vector.broadcast %7 : vector<1x128xf32> to vector<16x128xf32>
    %9 = arith.addf %4, %8 : vector<16x128xf32>
    %cst_5 = arith.constant 0.000000e+00 : f32
    %10 = vector.broadcast %cst_5 : f32 to vector<16x128xf32>
    %11 = arith.maximumf %9, %10 : vector<16x128xf32>
    %c1_i32 = arith.constant 1 : i32
    %12 = arith.index_cast %c1_i32 : i32 to index
    %c0_6 = arith.constant 0 : index
    %c0_7 = arith.constant 0 : index
    %13 = vector.load %arg2[%12, %c0_6, %c0_7] : memref<3x128x128xf32, #tpu.memory_space<vmem>>, vector<1x128x128xf32>
    %14 = vector.shape_cast %13 : vector<1x128x128xf32> to vector<128x128xf32>
    %cst_8 = arith.constant dense<0.000000e+00> : vector<16x128xf32>
    %15 = tpu.matmul %11, %14, %cst_8 {dimension_numbers = #tpu.dot_dimension_numbers<[1], [0], [0], [1], [0, 0, 1, 1], [], []>} : vector<16x128xf32>, vector<128x128xf32>, vector<16x128xf32> -> vector<16x128xf32>
    %16 = arith.index_cast %c1_i32 : i32 to index
    %c0_9 = arith.constant 0 : index
    %c0_10 = arith.constant 0 : index
    %17 = vector.load %arg3[%16, %c0_9, %c0_10] : memref<3x1x128xf32, #tpu.memory_space<vmem>>, vector<1x1x128xf32>
    %18 = vector.shape_cast %17 : vector<1x1x128xf32> to vector<1x128xf32>
    %19 = vector.broadcast %18 : vector<1x128xf32> to vector<16x128xf32>
    %20 = arith.addf %15, %19 : vector<16x128xf32>
    %cst_11 = arith.constant 0.000000e+00 : f32
    %21 = vector.broadcast %cst_11 : f32 to vector<16x128xf32>
    %22 = arith.maximumf %20, %21 : vector<16x128xf32>
    %c2_i32 = arith.constant 2 : i32
    %23 = arith.index_cast %c2_i32 : i32 to index
    %c0_12 = arith.constant 0 : index
    %c0_13 = arith.constant 0 : index
    %24 = vector.load %arg2[%23, %c0_12, %c0_13] : memref<3x128x128xf32, #tpu.memory_space<vmem>>, vector<1x128x128xf32>
    %25 = vector.shape_cast %24 : vector<1x128x128xf32> to vector<128x128xf32>
    %cst_14 = arith.constant dense<0.000000e+00> : vector<16x128xf32>
    %26 = tpu.matmul %22, %25, %cst_14 {dimension_numbers = #tpu.dot_dimension_numbers<[1], [0], [0], [1], [0, 0, 1, 1], [], []>} : vector<16x128xf32>, vector<128x128xf32>, vector<16x128xf32> -> vector<16x128xf32>
    %27 = arith.index_cast %c2_i32 : i32 to index
    %c0_15 = arith.constant 0 : index
    %c0_16 = arith.constant 0 : index
    %28 = vector.load %arg3[%27, %c0_15, %c0_16] : memref<3x1x128xf32, #tpu.memory_space<vmem>>, vector<1x1x128xf32>
    %29 = vector.shape_cast %28 : vector<1x1x128xf32> to vector<1x128xf32>
    %30 = vector.broadcast %29 : vector<1x128xf32> to vector<16x128xf32>
    %31 = arith.addf %26, %30 : vector<16x128xf32>
    %cst_17 = arith.constant 0.000000e+00 : f32
    %32 = vector.broadcast %cst_17 : f32 to vector<16x128xf32>
    %33 = arith.maximumf %31, %32 : vector<16x128xf32>
    %c3_i32 = arith.constant 3 : i32
    %c0_18 = arith.constant 0 : index
    %c0_19 = arith.constant 0 : index
    %34 = vector.load %arg4[%c0_18, %c0_19] : memref<16x128xf32, #tpu.memory_space<vmem>>, vector<16x128xf32>
    tpu.vector_store %arg4[%c0_18, %c0_19], %33 {strides = array<i32>} : memref<16x128xf32, #tpu.memory_space<vmem>>, vector<16x128xf32>,
    return
  }
  func.func @transform_0(%arg0: i32) -> (i32, i32) {
    %c0_i32 = arith.constant 0 : i32
    %c0_i32_0 = arith.constant 0 : i32
    return %arg0, %c0_i32 : i32, i32
  }
  func.func @transform_1(%arg0: i32) -> (i32, i32, i32) {
    %c0_i32 = arith.constant 0 : i32
    %c0_i32_0 = arith.constant 0 : i32
    %c0_i32_1 = arith.constant 0 : i32
    %c0_i32_2 = arith.constant 0 : i32
    return %c0_i32, %c0_i32_0, %c0_i32_1 : i32, i32, i32
  }
  func.func @transform_2(%arg0: i32) -> (i32, i32, i32) {
    %c0_i32 = arith.constant 0 : i32
    %c0_i32_0 = arith.constant 0 : i32
    %c0_i32_1 = arith.constant 0 : i32
    %c0_i32_2 = arith.constant 0 : i32
    return %c0_i32, %c0_i32_0, %c0_i32_1 : i32, i32, i32
  }
  func.func @transform_3(%arg0: i32) -> (i32, i32) {
    %c0_i32 = arith.constant 0 : i32
    %c0_i32_0 = arith.constant 0 : i32
    return %arg0, %c0_i32 : i32, i32
  }
}

</mosaic_0001>

<llo_original>
// kernel: hidden_layer_forward.1
$region0: #{hidden_layer_forward.1}
  #allocation0 [shape = 'u32[]', space=smem, size = 0x4, offset = 0x4, fixed_abs, tag = 'smem constant byte address 0x4 - core index']
  #allocation1 [shape = 'u32[144,128]{1,0:T(1,128)}', space=vmem, size = 0x12000, scoped, tag = 'internal scratch']
  %s0 = inlined_call_operand.hbm [shape: f32[16,128], index: 0, kind: input, shape index: {}]
  %s1 = inlined_call_operand.hbm [shape: f32[3,128,128], index: 1, kind: input, shape index: {}]
  %s2 = inlined_call_operand.vmem [shape: f32[3,1,128], index: 2, kind: input, shape index: {}]
  %s3 = inlined_call_operand.hbm [shape: f32[16,128], index: 3, kind: output, shape index: {}]
  %s4 = sld [smem:[#allocation0]]
  $region30: #{hidden_layer_forward.1} parent=0
    _
  %s6 = ssub.s32 1, %s4
  %s7 = scalar_select 0, %s6, %s4
  $region1: #{hidden_layer_forward.1} parent=0
    #allocation2 [shape = 'u8[8192]{0}', space=vmem, size = 0x2000, scoped, tag = 'input window, operand 0, single buffered']
    #allocation3 [shape = 's32[1]{0}', space=sflag, size = 0x4, scoped, tag = 'scoped memory for hidden_layer_forward.1']
    #allocation4 [shape = 's32[1]{0}', space=sflag, size = 0x4, scoped, tag = 'scoped memory for hidden_layer_forward.1']
    #allocation5 [shape = 'u8[196608]{0}', space=vmem, size = 0x30000, scoped, tag = 'input window, operand 1, single buffered']
    #allocation6 [shape = 's32[1]{0}', space=sflag, size = 0x4, scoped, tag = 'scoped memory for hidden_layer_forward.1']
    #allocation7 [shape = 'u8[8192]{0}', space=vmem, size = 0x2000, scoped, tag = 'output window, operand 0, single buffered']
    %8 = vsyncpa [#allocation3], 0
    %9 = vsyncpa [#allocation6], 0
    %10 = vsyncpa [#allocation4], 0
    // Predicated region
    $region2: #{hidden_layer_forward.1} parent=1 // pred_check
      _
    $region3: #{hidden_layer_forward.1} parent=1 // pred_check_branch
      %12 = sbr.rel (0) target = $region5
    $region4: #{hidden_layer_forward.1} parent=1 // pred_region
      %s14 = ssub.s32 256, 256
      %15 = vsyncadd [#allocation3], %s14
      %s16 = sshll.u32 [#allocation2], 4
      %s17 = int_to_ptr.vmem [resolvable:$true] %s16
      %22 = dma.hbm_to_vmem [thread:$0]  %s0, 256, %s17, [#allocation3], 128, 128, 8
    $region5: #{hidden_layer_forward.1} parent=1 // pred_fallthru
      _
    // Predicated region
    $region6: #{hidden_layer_forward.1} parent=1 // pred_check
      _
    $region7: #{hidden_layer_forward.1} parent=1 // pred_check_branch
      %24 = sbr.rel (0) target = $region9
    $region8: #{hidden_layer_forward.1} parent=1 // pred_region
      %s26 = ssub.s32 6144, 6144
      %27 = vsyncadd [#allocation6], %s26
      %s28 = sshll.u32 [#allocation5], 4
      %s29 = int_to_ptr.vmem [resolvable:$true] %s28
      %34 = dma.hbm_to_vmem [thread:$0]  %s1, 6144, %s29, [#allocation6], 128, 128, 8
    $region9: #{hidden_layer_forward.1} parent=1 // pred_fallthru
      _
    // Predicated region
    $region10: #{hidden_layer_forward.1} parent=1 // pred_check
      _
    $region11: #{hidden_layer_forward.1} parent=1 // pred_check_branch
      %36 = sbr.rel (0) target = $region13
    $region12: #{hidden_layer_forward.1} parent=1 // pred_region
      _
    $region13: #{hidden_layer_forward.1} parent=1 // pred_fallthru
      _
    // Predicated region
    $region14: #{hidden_layer_forward.1} parent=1 // pred_check
      _
    $region15: #{hidden_layer_forward.1} parent=1 // pred_check_branch
      %38 = sbr.rel (0) target = $region17
    $region16: #{hidden_layer_forward.1} parent=1 // pred_region
      %39 = dma.done [#allocation3], 256
    $region17: #{hidden_layer_forward.1} parent=1 // pred_fallthru
      _
    // Predicated region
    $region18: #{hidden_layer_forward.1} parent=1 // pred_check
      _
    $region19: #{hidden_layer_forward.1} parent=1 // pred_check_branch
      %41 = sbr.rel (0) target = $region21
    $region20: #{hidden_layer_forward.1} parent=1 // pred_region
      %42 = dma.done [#allocation6], 6144
    $region21: #{hidden_layer_forward.1} parent=1 // pred_fallthru
      _
    %v43 = vld [vmem:[#allocation2] sm:$0xff]
    %v44 = vld [vmem:[#allocation2 + $0x8] sm:$0xff]
    %v45 = vld [vmem:[#allocation5] sm:$0xff]
    %v46 = vld [vmem:[#allocation5 + $0x8] sm:$0xff]
    %v47 = vld [vmem:[#allocation5 + $0x10] sm:$0xff]
    %v48 = vld [vmem:[#allocation5 + $0x18] sm:$0xff]
    %v49 = vld [vmem:[#allocation5 + $0x20] sm:$0xff]
    %v50 = vld [vmem:[#allocation5 + $0x28] sm:$0xff]
    %v51 = vld [vmem:[#allocation5 + $0x30] sm:$0xff]
    %v52 = vld [vmem:[#allocation5 + $0x38] sm:$0xff]
    %v53 = vld [vmem:[#allocation5 + $0x40] sm:$0xff]
    %v54 = vld [vmem:[#allocation5 + $0x48] sm:$0xff]
    %v55 = vld [vmem:[#allocation5 + $0x50] sm:$0xff]
    %v56 = vld [vmem:[#allocation5 + $0x58] sm:$0xff]
    %v57 = vld [vmem:[#allocation5 + $0x60] sm:$0xff]
    %v58 = vld [vmem:[#allocation5 + $0x68] sm:$0xff]
    %v59 = vld [vmem:[#allocation5 + $0x70] sm:$0xff]
    %v60 = vld [vmem:[#allocation5 + $0x78] sm:$0xff]
    %v61 = vld [vmem:[%s2] sm:$0x1]
    %v63 = vlaneseq
    %v64 = vshrl.u32 %v63, 7
    %v65 = vsub.s32 0, %v64
    %v66 = vrot.slane %v61, %v65
    %68 = vmatprep.subr.mxu0 0.0
    %69 = vmatpush1.msra.mxu0 %v45
    %70 = vmatprep.subr.mxu0 0.0
    %71 = vmatpush1.msra.mxu0 %v46
    %72 = vmatprep.subr.mxu0 0.0
    %73 = vmatpush1.msra.mxu0 %v47
    %74 = vmatprep.subr.mxu0 0.0
    %75 = vmatpush1.msra.mxu0 %v48
    %76 = vmatprep.subr.mxu0 0.0
    %77 = vmatpush1.msra.mxu0 %v49
    %78 = vmatprep.subr.mxu0 0.0
    %79 = vmatpush1.msra.mxu0 %v50
    %80 = vmatprep.subr.mxu0 0.0
    %81 = vmatpush1.msra.mxu0 %v51
    %82 = vmatprep.subr.mxu0 0.0
    %83 = vmatpush1.msra.mxu0 %v52
    %84 = vmatprep.subr.mxu0 0.0
    %85 = vmatpush1.msra.mxu0 %v53
    %86 = vmatprep.subr.mxu0 0.0
    %87 = vmatpush1.msra.mxu0 %v54
    %88 = vmatprep.subr.mxu0 0.0
    %89 = vmatpush1.msra.mxu0 %v55
    %90 = vmatprep.subr.mxu0 0.0
    %91 = vmatpush1.msra.mxu0 %v56
    %92 = vmatprep.subr.mxu0 0.0
    %93 = vmatpush1.msra.mxu0 %v57
    %94 = vmatprep.subr.mxu0 0.0
    %95 = vmatpush1.msra.mxu0 %v58
    %96 = vmatprep.subr.mxu0 0.0
    %97 = vmatpush1.msra.mxu0 %v59
    %98 = vmatprep.subr.mxu0 0.0
    %99 = vmatpush1.msra.mxu0 %v60
    %100 = vmatprep.subr.mxu0 0.0
    %101 = vmatpush1.msra.mxu0 0.0
    %102 = vmatprep.subr.mxu0 0.0
    %103 = vmatpush1.msra.mxu0 0.0
    %104 = vmatprep.subr.mxu0 0.0
    %105 = vmatpush1.msra.mxu0 0.0
    %106 = vmatprep.subr.mxu0 0.0
    %107 = vmatpush1.msra.mxu0 0.0
    %108 = vmatprep.subr.mxu0 0.0
    %109 = vmatpush1.msra.mxu0 0.0
    %110 = vmatprep.subr.mxu0 0.0
    %111 = vmatpush1.msra.mxu0 0.0
    %112 = vmatprep.subr.mxu0 0.0
    %113 = vmatpush1.msra.mxu0 0.0
    %114 = vmatprep.subr.mxu0 0.0
    %115 = vmatpush1.msra.mxu0 0.0
    %116 = vmatprep.subr.mxu0 0.0
    %117 = vmatpush1.msra.mxu0 0.0
    %118 = vmatprep.subr.mxu0 0.0
    %119 = vmatpush1.msra.mxu0 0.0
    %120 = vmatprep.subr.mxu0 0.0
    %121 = vmatpush1.msra.mxu0 0.0
    %122 = vmatprep.subr.mxu0 0.0
    %123 = vmatpush1.msra.mxu0 0.0
    %124 = vmatprep.subr.mxu0 0.0
    %125 = vmatpush1.msra.mxu0 0.0
    %126 = vmatprep.subr.mxu0 0.0
    %127 = vmatpush1.msra.mxu0 0.0
    %128 = vmatprep.subr.mxu0 0.0
    %129 = vmatpush1.msra.mxu0 0.0
    %130 = vmatprep.subr.mxu0 0.0
    %131 = vmatpush1.msra.mxu0 0.0
    %132 = vmatprep.mubr.f32.mxu0 0.0
    %133 = vmatmul.mubr.f32.gmra.mrb[0].mxu0 %v43
    %v134 = vpop.f32.mrb[0].mxu0
    %v135 = vadd.f32 %v66, %v134
    %v136 = vpop.f32.mrb[0].mxu0
    %137 = vmatprep.mubr.f32.mxu0 0.0
    %138 = vmatmul.mubr.f32.gmra.mrb[0].mxu0 %v44
    %v139 = vpop.f32.mrb[0].mxu0
    %v140 = vadd.f32 %v66, %v139
    %v141 = vpop.f32.mrb[0].mxu0
    %142 = vdwg.mxu0
    %v143 = vmax.f32 %v135, 0.0
    %v144 = vmax.f32 %v140, 0.0
    %s145 = scalar_lea.vmem [#allocation5], 128
    %v146 = vld [vmem:[%s145] sm:$0xff]
    %v147 = vld [vmem:[%s145 + $0x8] sm:$0xff]
    %v148 = vld [vmem:[%s145 + $0x10] sm:$0xff]
    %v149 = vld [vmem:[%s145 + $0x18] sm:$0xff]
    %v150 = vld [vmem:[%s145 + $0x20] sm:$0xff]
    %v151 = vld [vmem:[%s145 + $0x28] sm:$0xff]
    %v152 = vld [vmem:[%s145 + $0x30] sm:$0xff]
    %v153 = vld [vmem:[%s145 + $0x38] sm:$0xff]
    %v154 = vld [vmem:[%s145 + $0x40] sm:$0xff]
    %v155 = vld [vmem:[%s145 + $0x48] sm:$0xff]
    %v156 = vld [vmem:[%s145 + $0x50] sm:$0xff]
    %v157 = vld [vmem:[%s145 + $0x58] sm:$0xff]
    %v158 = vld [vmem:[%s145 + $0x60] sm:$0xff]
    %v159 = vld [vmem:[%s145 + $0x68] sm:$0xff]
    %v160 = vld [vmem:[%s145 + $0x70] sm:$0xff]
    %v161 = vld [vmem:[%s145 + $0x78] sm:$0xff]
    %s162 = scalar_lea.vmem %s2, 1
    %v163 = vld [vmem:[%s162] sm:$0x1]
    %v165 = vlaneseq
    %v166 = vshrl.u32 %v165, 7
    %v167 = vsub.s32 0, %v166
    %v168 = vrot.slane %v163, %v167
    %170 = vmatprep.subr.mxu0 0.0
    %171 = vmatpush1.msra.mxu0 %v146
    %172 = vmatprep.subr.mxu0 0.0
    %173 = vmatpush1.msra.mxu0 %v147
    %174 = vmatprep.subr.mxu0 0.0
    %175 = vmatpush1.msra.mxu0 %v148
    %176 = vmatprep.subr.mxu0 0.0
    %177 = vmatpush1.msra.mxu0 %v149
    %178 = vmatprep.subr.mxu0 0.0
    %179 = vmatpush1.msra.mxu0 %v150
    %180 = vmatprep.subr.mxu0 0.0
    %181 = vmatpush1.msra.mxu0 %v151
    %182 = vmatprep.subr.mxu0 0.0
    %183 = vmatpush1.msra.mxu0 %v152
    %184 = vmatprep.subr.mxu0 0.0
    %185 = vmatpush1.msra.mxu0 %v153
    %186 = vmatprep.subr.mxu0 0.0
    %187 = vmatpush1.msra.mxu0 %v154
    %188 = vmatprep.subr.mxu0 0.0
    %189 = vmatpush1.msra.mxu0 %v155
    %190 = vmatprep.subr.mxu0 0.0
    %191 = vmatpush1.msra.mxu0 %v156
    %192 = vmatprep.subr.mxu0 0.0
    %193 = vmatpush1.msra.mxu0 %v157
    %194 = vmatprep.subr.mxu0 0.0
    %195 = vmatpush1.msra.mxu0 %v158
    %196 = vmatprep.subr.mxu0 0.0
    %197 = vmatpush1.msra.mxu0 %v159
    %198 = vmatprep.subr.mxu0 0.0
    %199 = vmatpush1.msra.mxu0 %v160
    %200 = vmatprep.subr.mxu0 0.0
    %201 = vmatpush1.msra.mxu0 %v161
    %202 = vmatprep.subr.mxu0 0.0
    %203 = vmatpush1.msra.mxu0 0.0
    %204 = vmatprep.subr.mxu0 0.0
    %205 = vmatpush1.msra.mxu0 0.0
    %206 = vmatprep.subr.mxu0 0.0
    %207 = vmatpush1.msra.mxu0 0.0
    %208 = vmatprep.subr.mxu0 0.0
    %209 = vmatpush1.msra.mxu0 0.0
    %210 = vmatprep.subr.mxu0 0.0
    %211 = vmatpush1.msra.mxu0 0.0
    %212 = vmatprep.subr.mxu0 0.0
    %213 = vmatpush1.msra.mxu0 0.0
    %214 = vmatprep.subr.mxu0 0.0
    %215 = vmatpush1.msra.mxu0 0.0
    %216 = vmatprep.subr.mxu0 0.0
    %217 = vmatpush1.msra.mxu0 0.0
    %218 = vmatprep.subr.mxu0 0.0
    %219 = vmatpush1.msra.mxu0 0.0
    %220 = vmatprep.subr.mxu0 0.0
    %221 = vmatpush1.msra.mxu0 0.0
    %222 = vmatprep.subr.mxu0 0.0
    %223 = vmatpush1.msra.mxu0 0.0
    %224 = vmatprep.subr.mxu0 0.0
    %225 = vmatpush1.msra.mxu0 0.0
    %226 = vmatprep.subr.mxu0 0.0
    %227 = vmatpush1.msra.mxu0 0.0
    %228 = vmatprep.subr.mxu0 0.0
    %229 = vmatpush1.msra.mxu0 0.0
    %230 = vmatprep.subr.mxu0 0.0
    %231 = vmatpush1.msra.mxu0 0.0
    %232 = vmatprep.subr.mxu0 0.0
    %233 = vmatpush1.msra.mxu0 0.0
    %234 = vmatprep.mubr.f32.mxu0 0.0
    %235 = vmatmul.mubr.f32.gmra.mrb[0].mxu0 %v143
    %v236 = vpop.f32.mrb[0].mxu0
    %v237 = vadd.f32 %v168, %v236
    %v238 = vpop.f32.mrb[0].mxu0
    %239 = vmatprep.mubr.f32.mxu0 0.0
    %240 = vmatmul.mubr.f32.gmra.mrb[0].mxu0 %v144
    %v241 = vpop.f32.mrb[0].mxu0
    %v242 = vadd.f32 %v168, %v241
    %v243 = vpop.f32.mrb[0].mxu0
    %244 = vdwg.mxu0
    %v245 = vmax.f32 %v237, 0.0
    %v246 = vmax.f32 %v242, 0.0
    %s247 = scalar_lea.vmem [#allocation5], 256
    %v248 = vld [vmem:[%s247] sm:$0xff]
    %v249 = vld [vmem:[%s247 + $0x8] sm:$0xff]
    %v250 = vld [vmem:[%s247 + $0x10] sm:$0xff]
    %v251 = vld [vmem:[%s247 + $0x18] sm:$0xff]
    %v252 = vld [vmem:[%s247 + $0x20] sm:$0xff]
    %v253 = vld [vmem:[%s247 + $0x28] sm:$0xff]
    %v254 = vld [vmem:[%s247 + $0x30] sm:$0xff]
    %v255 = vld [vmem:[%s247 + $0x38] sm:$0xff]
    %v256 = vld [vmem:[%s247 + $0x40] sm:$0xff]
    %v257 = vld [vmem:[%s247 + $0x48] sm:$0xff]
    %v258 = vld [vmem:[%s247 + $0x50] sm:$0xff]
    %v259 = vld [vmem:[%s247 + $0x58] sm:$0xff]
    %v260 = vld [vmem:[%s247 + $0x60] sm:$0xff]
    %v261 = vld [vmem:[%s247 + $0x68] sm:$0xff]
    %v262 = vld [vmem:[%s247 + $0x70] sm:$0xff]
    %v263 = vld [vmem:[%s247 + $0x78] sm:$0xff]
    %s264 = scalar_lea.vmem %s2, 2
    %v265 = vld [vmem:[%s264] sm:$0x1]
    %v267 = vlaneseq
    %v268 = vshrl.u32 %v267, 7
    %v269 = vsub.s32 0, %v268
    %v270 = vrot.slane %v265, %v269
    %272 = vmatprep.subr.mxu0 0.0
    %273 = vmatpush1.msra.mxu0 %v248
    %274 = vmatprep.subr.mxu0 0.0
    %275 = vmatpush1.msra.mxu0 %v249
    %276 = vmatprep.subr.mxu0 0.0
    %277 = vmatpush1.msra.mxu0 %v250
    %278 = vmatprep.subr.mxu0 0.0
    %279 = vmatpush1.msra.mxu0 %v251
    %280 = vmatprep.subr.mxu0 0.0
    %281 = vmatpush1.msra.mxu0 %v252
    %282 = vmatprep.subr.mxu0 0.0
    %283 = vmatpush1.msra.mxu0 %v253
    %284 = vmatprep.subr.mxu0 0.0
    %285 = vmatpush1.msra.mxu0 %v254
    %286 = vmatprep.subr.mxu0 0.0
    %287 = vmatpush1.msra.mxu0 %v255
    %288 = vmatprep.subr.mxu0 0.0
    %289 = vmatpush1.msra.mxu0 %v256
    %290 = vmatprep.subr.mxu0 0.0
    %291 = vmatpush1.msra.mxu0 %v257
    %292 = vmatprep.subr.mxu0 0.0
    %293 = vmatpush1.msra.mxu0 %v258
    %294 = vmatprep.subr.mxu0 0.0
    %295 = vmatpush1.msra.mxu0 %v259
    %296 = vmatprep.subr.mxu0 0.0
    %297 = vmatpush1.msra.mxu0 %v260
    %298 = vmatprep.subr.mxu0 0.0
    %299 = vmatpush1.msra.mxu0 %v261
    %300 = vmatprep.subr.mxu0 0.0
    %301 = vmatpush1.msra.mxu0 %v262
    %302 = vmatprep.subr.mxu0 0.0
    %303 = vmatpush1.msra.mxu0 %v263
    %304 = vmatprep.subr.mxu0 0.0
    %305 = vmatpush1.msra.mxu0 0.0
    %306 = vmatprep.subr.mxu0 0.0
    %307 = vmatpush1.msra.mxu0 0.0
    %308 = vmatprep.subr.mxu0 0.0
    %309 = vmatpush1.msra.mxu0 0.0
    %310 = vmatprep.subr.mxu0 0.0
    %311 = vmatpush1.msra.mxu0 0.0
    %312 = vmatprep.subr.mxu0 0.0
    %313 = vmatpush1.msra.mxu0 0.0
    %314 = vmatprep.subr.mxu0 0.0
    %315 = vmatpush1.msra.mxu0 0.0
    %316 = vmatprep.subr.mxu0 0.0
    %317 = vmatpush1.msra.mxu0 0.0
    %318 = vmatprep.subr.mxu0 0.0
    %319 = vmatpush1.msra.mxu0 0.0
    %320 = vmatprep.subr.mxu0 0.0
    %321 = vmatpush1.msra.mxu0 0.0
    %322 = vmatprep.subr.mxu0 0.0
    %323 = vmatpush1.msra.mxu0 0.0
    %324 = vmatprep.subr.mxu0 0.0
    %325 = vmatpush1.msra.mxu0 0.0
    %326 = vmatprep.subr.mxu0 0.0
    %327 = vmatpush1.msra.mxu0 0.0
    %328 = vmatprep.subr.mxu0 0.0
    %329 = vmatpush1.msra.mxu0 0.0
    %330 = vmatprep.subr.mxu0 0.0
    %331 = vmatpush1.msra.mxu0 0.0
    %332 = vmatprep.subr.mxu0 0.0
    %333 = vmatpush1.msra.mxu0 0.0
    %334 = vmatprep.subr.mxu0 0.0
    %335 = vmatpush1.msra.mxu0 0.0
    %336 = vmatprep.mubr.f32.mxu0 0.0
    %337 = vmatmul.mubr.f32.gmra.mrb[0].mxu0 %v245
    %v338 = vpop.f32.mrb[0].mxu0
    %v339 = vadd.f32 %v270, %v338
    %v340 = vpop.f32.mrb[0].mxu0
    %341 = vmatprep.mubr.f32.mxu0 0.0
    %342 = vmatmul.mubr.f32.gmra.mrb[0].mxu0 %v246
    %v343 = vpop.f32.mrb[0].mxu0
    %v344 = vadd.f32 %v270, %v343
    %v345 = vpop.f32.mrb[0].mxu0
    %346 = vdwg.mxu0
    %v347 = vmax.f32 %v339, 0.0
    %v348 = vmax.f32 %v344, 0.0
    %349 = vst [vmem:[#allocation7] sm:$0xff] %v347
    %350 = vst [vmem:[#allocation7 + $0x8] sm:$0xff] %v348
    // Predicated region
    $region22: #{hidden_layer_forward.1} parent=1 // pred_check
      _
    $region23: #{hidden_layer_forward.1} parent=1 // pred_check_branch
      %352 = sbr.rel (0) target = $region25
    $region24: #{hidden_layer_forward.1} parent=1 // pred_region
      %s354 = ssub.s32 256, 256
      %355 = vsyncadd [#allocation4], %s354
      %s356 = sshll.u32 [#allocation7], 4
      %s357 = int_to_ptr.vmem [resolvable:$true] %s356
      %362 = dma.vmem_to_hbm [thread:$0]  %s357, 256, %s3, [#allocation4], 128, 128, 8
    $region25: #{hidden_layer_forward.1} parent=1 // pred_fallthru
      _
    // Predicated region
    $region26: #{hidden_layer_forward.1} parent=1 // pred_check
      _
    $region27: #{hidden_layer_forward.1} parent=1 // pred_check_branch
      %364 = sbr.rel (0) target = $region29
    $region28: #{hidden_layer_forward.1} parent=1 // pred_region
      %365 = dma.done [#allocation4], 256
    $region29: #{hidden_layer_forward.1} parent=1 // pred_fallthru
      _
    %366 = vsyncpa [#allocation3], 1
    %367 = vsyncpa [#allocation6], 1
    %368 = vsyncpa [#allocation4], 1

</llo_original>
